<compile_context>
chip_gen: v6e
topology: v6e:2x2x1
jax: 0.10.0
libtpu: 0.0.40
codegen_flags: <defaults>
</compile_context>

<pallas_src>
import functools

import jax
import jax.numpy as jnp
from jax import lax
from jax.experimental import pallas as pl
from jax.experimental.pallas import tpu as pltpu


def _ssa_kernel(gamma_ref, w_ref, x_ref, o_ref, xxt_ref, m_ref, *, matmul_dtype):
    """Grid = (B, 2, N_tiles).

    phase p==0 : xxT += x_tile @ x_tile^T            (accumulate into scratch)
    phase p==1 : j==0: M = gamma * (xxT @ W)         (tiny (C,C) work)
                 all j: out_tile = M @ x_tile + x_tile
    """
    p = pl.program_id(1)
    j = pl.program_id(2)

    x_f32 = x_ref[...]                       # (C, tn) f32 (exact residual path)
    x_mm = x_f32.astype(matmul_dtype)        # MXU operands, f32 accumulate

    @pl.when(jnp.logical_and(p == 0, j == 0))
    def _init():
        xxt_ref[...] = jnp.zeros_like(xxt_ref)

    @pl.when(p == 0)
    def _accumulate():
        # x @ x^T without materializing a transpose: contract the lane (N)
        # dimension of both operands directly.
        xxt_ref[...] += lax.dot_general(
            x_mm, x_mm,
            dimension_numbers=(((1,), (1,)), ((), ())),
            preferred_element_type=jnp.float32)

    @pl.when(jnp.logical_and(p == 1, j == 0))
    def _build_m():
        w_mm = w_ref[...].astype(matmul_dtype)
        a = jnp.dot(xxt_ref[...].astype(matmul_dtype), w_mm,
                    preferred_element_type=jnp.float32)           # (C, C)
        m_ref[...] = gamma_ref[0] * a                             # fold gamma

    @pl.when(p == 1)
    def _emit():
        m_mm = m_ref[...].astype(matmul_dtype)
        o = jnp.dot(m_mm, x_mm, preferred_element_type=jnp.float32)
        o_ref[...] = (o + x_f32).astype(o_ref.dtype)              # exact residual


def simple_self_attention(x, weight, gamma, sym=False, tn=None,
                          matmul_dtype=jnp.bfloat16):
    """x: (B, C, H, W) float32; weight: (C, C, 1); gamma: (1,) float32."""
    B, C, H, W = x.shape
    N = H * W

    w = weight.reshape(C, C).astype(jnp.float32)
    if sym:
        w = (w + w.T) / 2.0

    x_flat = x.reshape(B, C, N)

    # Lane-dense output: pad N to a multiple of 128. Zero columns contribute
    # nothing to x @ x^T; padded output columns are sliced away afterwards.
    n_pad = ((N + 127) // 128) * 128
    if n_pad != N:
        x_flat = jnp.pad(x_flat, ((0, 0), (0, 0), (0, n_pad - N)))

    if tn is None:
        # Largest lane-aligned tile (<= 512) dividing padded N: bounded VMEM
        # per step (v7x / v5e scoped limit) while keeping big DMAs.
        for cand in (512, 384, 256, 128):
            if n_pad % cand == 0:
                tn = cand
                break
    num_tiles = n_pad // tn

    flops = B * (4 * C * C * n_pad + 2 * C ** 3)      # 2 streamed matmuls + (C,C)@(C,C)
    bytes_accessed = B * (3 * C * n_pad * 4) + C * C * 4 + 4

    kernel = functools.partial(_ssa_kernel, matmul_dtype=matmul_dtype)

    out_flat = pl.pallas_call(
        kernel,
        out_shape=jax.ShapeDtypeStruct((B, C, n_pad), x.dtype),
        grid_spec=pltpu.PrefetchScalarGridSpec(
            num_scalar_prefetch=0,
            grid=(B, 2, num_tiles),
            in_specs=[
                pl.BlockSpec(memory_space=pltpu.MemorySpace.SMEM),        # gamma
                pl.BlockSpec((C, C), lambda b, p, j: (0, 0)),             # W (spectral-normed)
                pl.BlockSpec((None, C, tn), lambda b, p, j: (b, 0, j)),   # x tile
            ],
            # During phase 0 the output index is pinned to tile 0 (j*p == 0),
            # so no garbage writebacks happen; each output tile is written to
            # HBM exactly once, from phase-1 content.
            out_specs=pl.BlockSpec((None, C, tn), lambda b, p, j: (b, 0, j * p)),
            scratch_shapes=[
                pltpu.VMEM((C, C), jnp.float32),   # xxT accumulator
                pltpu.VMEM((C, C), jnp.float32),   # M = gamma * (xxT @ W)
            ],
        ),
        compiler_params=pltpu.CompilerParams(
            dimension_semantics=("parallel", "arbitrary", "arbitrary"),
            vmem_limit_bytes=32 * 1024 * 1024,
        ),
        cost_estimate=pl.CostEstimate(
            flops=flops, transcendentals=0, bytes_accessed=bytes_accessed),
    )(gamma, w, x_flat)

    if n_pad != N:
        out_flat = out_flat[:, :, :N]
    return out_flat.reshape(B, C, H, W)


def init_params(key, n_in):
    """Matches the PyTorch module init: kaiming_normal_ conv1d weight (fan_in,
    gain=sqrt(2)) + spectral normalization (power iteration); gamma = 0."""
    k_w, k_u = jax.random.split(key)
    std = (2.0 / n_in) ** 0.5
    w = jax.random.normal(k_w, (n_in, n_in, 1), dtype=jnp.float32) * std

    w_mat = w.reshape(n_in, n_in)
    u = jax.random.normal(k_u, (n_in,), dtype=jnp.float32)
    u = u / (jnp.linalg.norm(u) + 1e-12)
    for _ in range(20):
        v = w_mat.T @ u
        v = v / (jnp.linalg.norm(v) + 1e-12)
        u = w_mat @ v
        u = u / (jnp.linalg.norm(u) + 1e-12)
    sigma = u @ (w_mat @ v)
    w_sn = (w_mat / sigma).reshape(n_in, n_in, 1)

    gamma = jnp.zeros((1,), dtype=jnp.float32)
    return w_sn, gamma


def reference_forward(x, weight, gamma, sym=False):
    """Pure-JAX f32 reference with the original PyTorch op ordering."""
    B, C, H, W = x.shape
    w = weight.reshape(C, C)
    if sym:
        w = (w + w.T) / 2.0
    xf = x.reshape(B, C, H * W)
    convx = jnp.einsum("ij,bjn->bin", w, xf)
    xxT = jnp.einsum("bin,bjn->bij", xf, xf)
    o = jnp.einsum("bij,bjn->bin", xxT, convx)
    o = gamma[0] * o + xf
    return o.reshape(B, C, H, W)


if __name__ == "__main__":
    key = jax.random.PRNGKey(0)
    k_x, k_p = jax.random.split(key)

    B, C, H, W = 2, 4, 16, 16
    x = jax.random.normal(k_x, (B, C, H, W), dtype=jnp.float32)

    weight, gamma0 = init_params(k_p, C)
    gamma_nz = jnp.array([0.3], dtype=jnp.float32)

    # (gamma, sym, matmul_dtype, relative tolerance)
    cases = (
        (gamma0, False, jnp.bfloat16, 1e-6),    # gamma == 0 -> exact identity
        (gamma_nz, False, jnp.float32, 1e-4),   # f32 matmul path, tight
        (gamma_nz, False, jnp.bfloat16, 8e-2),  # bf16 MXU path, loose
        (gamma_nz, True, jnp.bfloat16, 8e-2),   # sym weight
    )
    for g, sym, mmdt, rtol in cases:
        out = jax.block_until_ready(
            simple_self_attention(x, weight, g, sym=sym, matmul_dtype=mmdt))
        ref = reference_forward(x, weight, g, sym=sym)
        assert out.shape == (B, C, H, W)
        err = float(jnp.max(jnp.abs(out - ref)))
        scale = float(jnp.max(jnp.abs(ref))) + 1e-6
        assert err <= rtol * scale, (
            f"mismatch (sym={sym}, dtype={mmdt}): max abs err {err}, scale {scale}")

    print("KERNEL_OK")
</pallas_src>

<mosaic_0001>
module attributes {stable_mosaic.version = 11 : i64} {
  func.func @_ssa_kernel(%arg0: i32, %arg1: i32, %arg2: i32, %arg3: memref<1xf32, #tpu.memory_space<smem>>, %arg4: memref<4x4xf32, #tpu.memory_space<vmem>>, %arg5: memref<1x4x256xf32, #tpu.memory_space<vmem>>, %arg6: memref<1x4x256xf32, #tpu.memory_space<vmem>>, %arg7: memref<4x4xf32, #tpu.memory_space<vmem>>, %arg8: memref<4x4xf32, #tpu.memory_space<vmem>>) attributes {dimension_semantics = [#tpu.dimension_semantics<parallel>, #tpu.dimension_semantics<arbitrary>, #tpu.dimension_semantics<arbitrary>], iteration_bounds = array<i64: 2, 2, 1>, scalar_prefetch = 0 : i64, scratch_operands = 2 : i64, tpu.core_type = #tpu.core_type<tc>, window_params = [{transform_indices = @transform_0, window_bounds = array<i64: 1>}, {pipeline_mode = #tpu.pipeline_mode<synchronous>, transform_indices = @transform_1, window_bounds = array<i64: 4, 4>}, {transform_indices = @transform_2, window_bounds = array<i64: 1, 4, 256>}, {transform_indices = @transform_3, window_bounds = array<i64: 1, 4, 256>}]} {
    %c0 = arith.constant 0 : index
    %c0_0 = arith.constant 0 : index
    %c0_1 = arith.constant 0 : index
    %0 = vector.load %arg5[%c0, %c0_0, %c0_1] : memref<1x4x256xf32, #tpu.memory_space<vmem>>, vector<1x4x256xf32>
    %1 = vector.shape_cast %0 : vector<1x4x256xf32> to vector<4x256xf32>
    %2 = arith.truncf %1 : vector<4x256xf32> to vector<4x256xbf16>
    %c0_i32 = arith.constant 0 : i32
    %3 = arith.cmpi eq, %arg1, %c0_i32 : i32
    %c0_i32_2 = arith.constant 0 : i32
    %4 = arith.cmpi eq, %arg2, %c0_i32_2 : i32
    %5 = arith.andi %3, %4 : i1
    %6 = arith.extui %5 : i1 to i32
    %c0_i32_3 = arith.constant 0 : i32
    %7 = arith.cmpi ne, %6, %c0_i32_3 : i32
    scf.if %7 {
      %cst = arith.constant 0.000000e+00 : f32
      %19 = vector.broadcast %cst : f32 to vector<4x4xf32>
      %c0_10 = arith.constant 0 : index
      %c0_11 = arith.constant 0 : index
      %20 = vector.load %arg7[%c0_10, %c0_11] : memref<4x4xf32, #tpu.memory_space<vmem>>, vector<4x4xf32>
      tpu.vector_store %arg7[%c0_10, %c0_11], %19 {strides = array<i32>} : memref<4x4xf32, #tpu.memory_space<vmem>>, vector<4x4xf32>,
    } else {
    }
    %c0_i32_4 = arith.constant 0 : i32
    %8 = arith.cmpi eq, %arg1, %c0_i32_4 : i32
    %9 = arith.extui %8 : i1 to i32
    %c0_i32_5 = arith.constant 0 : i32
    %10 = arith.cmpi ne, %9, %c0_i32_5 : i32
    scf.if %10 {
      %c0_10 = arith.constant 0 : index
      %c0_11 = arith.constant 0 : index
      %19 = vector.load %arg7[%c0_10, %c0_11] : memref<4x4xf32, #tpu.memory_space<vmem>>, vector<4x4xf32>
      %cst = arith.constant dense<0.000000e+00> : vector<4x4xf32>
      %20 = tpu.matmul %2, %2, %cst {dimension_numbers = #tpu.dot_dimension_numbers<[1], [1], [0], [0], [0, 0, 1, 0], [], []>} : vector<4x256xbf16>, vector<4x256xbf16>, vector<4x4xf32> -> vector<4x4xf32>
      %21 = arith.addf %19, %20 : vector<4x4xf32>
      %c0_12 = arith.constant 0 : index
      %c0_13 = arith.constant 0 : index
      %22 = vector.load %arg7[%c0_12, %c0_13] : memref<4x4xf32, #tpu.memory_space<vmem>>, vector<4x4xf32>
      tpu.vector_store %arg7[%c0_12, %c0_13], %21 {strides = array<i32>} : memref<4x4xf32, #tpu.memory_space<vmem>>, vector<4x4xf32>,
    } else {
    }
    %c1_i32 = arith.constant 1 : i32
    %11 = arith.cmpi eq, %arg1, %c1_i32 : i32
    %c0_i32_6 = arith.constant 0 : i32
    %12 = arith.cmpi eq, %arg2, %c0_i32_6 : i32
    %13 = arith.andi %11, %12 : i1
    %14 = arith.extui %13 : i1 to i32
    %c0_i32_7 = arith.constant 0 : i32
    %15 = arith.cmpi ne, %14, %c0_i32_7 : i32
    scf.if %15 {
      %c0_10 = arith.constant 0 : index
      %c0_11 = arith.constant 0 : index
      %19 = vector.load %arg4[%c0_10, %c0_11] : memref<4x4xf32, #tpu.memory_space<vmem>>, vector<4x4xf32>
      %20 = arith.truncf %19 : vector<4x4xf32> to vector<4x4xbf16>
      %c0_12 = arith.constant 0 : index
      %c0_13 = arith.constant 0 : index
      %21 = vector.load %arg7[%c0_12, %c0_13] : memref<4x4xf32, #tpu.memory_space<vmem>>, vector<4x4xf32>
      %22 = arith.truncf %21 : vector<4x4xf32> to vector<4x4xbf16>
      %cst = arith.constant dense<0.000000e+00> : vector<4x4xf32>
      %23 = tpu.matmul %22, %20, %cst {dimension_numbers = #tpu.dot_dimension_numbers<[1], [0], [0], [1], [0, 0, 1, 1], [], []>} : vector<4x4xbf16>, vector<4x4xbf16>, vector<4x4xf32> -> vector<4x4xf32>
      %c0_14 = arith.constant 0 : index
      %24 = memref.load %arg3[%c0_14] : memref<1xf32, #tpu.memory_space<smem>>
      %25 = vector.broadcast %24 : f32 to vector<4x4xf32>
      %26 = arith.mulf %25, %23 : vector<4x4xf32>
      %c0_15 = arith.constant 0 : index
      %c0_16 = arith.constant 0 : index
      %27 = vector.load %arg8[%c0_15, %c0_16] : memref<4x4xf32, #tpu.memory_space<vmem>>, vector<4x4xf32>
      tpu.vector_store %arg8[%c0_15, %c0_16], %26 {strides = array<i32>} : memref<4x4xf32, #tpu.memory_space<vmem>>, vector<4x4xf32>,
    } else {
    }
    %c1_i32_8 = arith.constant 1 : i32
    %16 = arith.cmpi eq, %arg1, %c1_i32_8 : i32
    %17 = arith.extui %16 : i1 to i32
    %c0_i32_9 = arith.constant 0 : i32
    %18 = arith.cmpi ne, %17, %c0_i32_9 : i32
    scf.if %18 {
      %c0_10 = arith.constant 0 : index
      %c0_11 = arith.constant 0 : index
      %19 = vector.load %arg8[%c0_10, %c0_11] : memref<4x4xf32, #tpu.memory_space<vmem>>, vector<4x4xf32>
      %20 = arith.truncf %19 : vector<4x4xf32> to vector<4x4xbf16>
      %cst = arith.constant dense<0.000000e+00> : vector<4x256xf32>
      %21 = tpu.matmul %20, %2, %cst {dimension_numbers = #tpu.dot_dimension_numbers<[1], [0], [0], [1], [0, 0, 1, 1], [], []>} : vector<4x4xbf16>, vector<4x256xbf16>, vector<4x256xf32> -> vector<4x256xf32>
      %22 = arith.addf %21, %1 : vector<4x256xf32>
      %c0_12 = arith.constant 0 : index
      %c0_13 = arith.constant 0 : index
      %c0_14 = arith.constant 0 : index
      %23 = vector.load %arg6[%c0_12, %c0_13, %c0_14] : memref<1x4x256xf32, #tpu.memory_space<vmem>>, vector<1x4x256xf32>
      %24 = vector.shape_cast %23 : vector<1x4x256xf32> to vector<4x256xf32>
      %25 = vector.shape_cast %22 : vector<4x256xf32> to vector<1x4x256xf32>
      tpu.vector_store %arg6[%c0_12, %c0_13, %c0_14], %25 {strides = array<i32>} : memref<1x4x256xf32, #tpu.memory_space<vmem>>, vector<1x4x256xf32>,
    } else {
    }
    return
  }
  func.func @transform_0(%arg0: i32, %arg1: i32, %arg2: i32) -> i32 {
    %c0_i32 = arith.constant 0 : i32
    %c0_i32_0 = arith.constant 0 : i32
    return %c0_i32 : i32
  }
  func.func @transform_1(%arg0: i32, %arg1: i32, %arg2: i32) -> (i32, i32) {
    %c0_i32 = arith.constant 0 : i32
    %c0_i32_0 = arith.constant 0 : i32
    %c0_i32_1 = arith.constant 0 : i32
    return %c0_i32, %c0_i32_0 : i32, i32
  }
  func.func @transform_2(%arg0: i32, %arg1: i32, %arg2: i32) -> (i32, i32, i32) {
    %c0_i32 = arith.constant 0 : i32
    %c0_i32_0 = arith.constant 0 : i32
    return %arg0, %c0_i32, %arg2 : i32, i32, i32
  }
  func.func @transform_3(%arg0: i32, %arg1: i32, %arg2: i32) -> (i32, i32, i32) {
    %0 = arith.muli %arg2, %arg1 : i32
    %c0_i32 = arith.constant 0 : i32
    %c0_i32_0 = arith.constant 0 : i32
    return %arg0, %c0_i32, %0 : i32, i32, i32
  }
}

</mosaic_0001>

<llo_original>
// kernel: tpu_custom_call.1
$region0: #{tpu_custom_call.1}
  #allocation0 [shape = 'u32[]', space=smem, size = 0x4, offset = 0x4, fixed_abs, tag = 'smem constant byte address 0x4 - core index']
  #allocation1 [shape = 'u32[144,128]{1,0:T(1,128)}', space=vmem, size = 0x12000, scoped, tag = 'internal scratch']
  #allocation2 [shape = 'f32[4,4]{1,0:T(4,128)}', space=vmem, size = 0x800, scoped, tag = 'scratch operand']
  #allocation3 [shape = 'f32[4,4]{1,0:T(4,128)}', space=vmem, size = 0x800, scoped, tag = 'scratch operand']
  #allocation4 [shape = 'f32[1]{0:T(128)S(6)}', space=smem, size = 0x200, scoped, tag = 'scoped memory for tpu_custom_call.1']
  %s0 = inlined_call_operand.<no memory space> [shape: f32[1], index: 0, kind: input, shape index: {}]
  %s1 = inlined_call_operand.hbm [shape: f32[4,4], index: 1, kind: input, shape index: {}]
  %s2 = inlined_call_operand.hbm [shape: f32[2,4,256], index: 2, kind: input, shape index: {}]
  %s3 = inlined_call_operand.hbm [shape: f32[2,4,256], index: 3, kind: output, shape index: {}]
  %s4 = sld [smem:[#allocation0]]
  $region69: #{tpu_custom_call.1} parent=0
    _
  %s6 = ssub.s32 1, %s4
  %s7 = scalar_select 0, %s6, %s4
  %8 = sst [smem:[#allocation4]] %s0
  $region1: #{tpu_custom_call.1} parent=0
    #allocation5 [shape = 'u8[2048]{0}', space=vmem, size = 0x800, scoped, tag = 'input window, operand 1, single buffered']
    #allocation6 [shape = 's32[2]{0}', space=sflag, size = 0x8, scoped, tag = 'scoped memory for tpu_custom_call.1']
    #allocation7 [shape = 's32[2]{0}', space=sflag, size = 0x8, scoped, tag = 'scoped memory for tpu_custom_call.1']
    #allocation8 [shape = 'u8[8192]{0}', space=vmem, size = 0x2000, scoped, tag = 'input window, operand 2']
    #allocation9 [shape = 's32[2]{0}', space=sflag, size = 0x8, scoped, tag = 'scoped memory for tpu_custom_call.1']
    #allocation10 [shape = 'u8[8192]{0}', space=vmem, size = 0x2000, scoped, tag = 'output window, operand 0']
    %9 = vsyncpa [#allocation6], 0
    %10 = vsyncpa [#allocation9], 0
    %s11 = scalar_lea.sflag [#allocation9], 1
    %12 = vsyncpa %s11, 0
    %13 = vsyncpa [#allocation7], 0
    %s14 = scalar_lea.sflag [#allocation7], 1
    %15 = vsyncpa %s14, 0
    loop: start=0, step=1, limit=6
    $region2: #{tpu_custom_call.1} parent=1 // loop_pre_header
      _
    $region3: #{tpu_custom_call.1} parent=1 // loop_header
      %s17 = sphi 0, %s21
      %p18 = scmp.ge.s32.totalorder %s17, 6
      %s24 = sphi 0, %s43
      %s25 = sphi 0, %s39
      %s26 = sphi 0, %s35
      %s27 = sphi 0, %s24
      %s28 = sphi 0, %s25
      %s29 = sphi 0, %s26
      %s30 = sphi 0, %s27
      %s31 = sphi 0, %s28
      %s32 = sphi 0, %s29
      %s44 = sphi 0, %s44
      %s46 = sphi 0, %s44
      %s47 = sphi 0, %s46
      %s61 = sphi 0, %s47
      %s65 = sphi 0, %s65
      %s67 = sphi 0, %s65
      %s68 = sphi 0, %s67
      %s82 = sphi 0, %s68
      %s90 = sphi 0, %s92
      %s93 = sphi 0, %s90
      %s94 = sphi 0, %s93
      %s110 = sphi 0, %s94
      %s120 = sphi 0, %s122
      %s123 = sphi 0, %s120
      %s124 = sphi 0, %s123
      %s140 = sphi 0, %s124
    $region4: #{tpu_custom_call.1} parent=1 // loop_header_branch
      %20 = sbr.rel (%p18) target = $region8
    $region5: #{tpu_custom_call.1} parent=1 // loop_body
      %s22 = ssub.s32 %s17, 1
      %s23 = ssub.s32 %s17, 2
      %s33 = sadd.s32 1, %s26
      %p34 = scmp.ge.s32.totalorder %s33, 1
      %s35 = scalar_select %p34, 0, %s33
      %s36 = sadd.s32 1, %s25
      %s37 = scalar_select %p34, %s36, %s25
      %p38 = scmp.ge.s32.totalorder %s37, 2
      %s39 = scalar_select %p38, 0, %s37
      %s40 = sadd.s32 1, %s24
      %s41 = scalar_select %p38, %s40, %s24
      %p42 = scmp.ge.s32.totalorder %s41, 2
      %s43 = scalar_select %p42, 0, %s41
      %s45 = sadd.s32 %s44, 1
      %p48 = scmp.eq.s32.totalorder %s17, 3
      %p49 = scmp.ne.s32.totalorder %s44, %s46
      %p50 = scmp.eq.s32.totalorder %s17, 0
      %p51 = por %p49, %p50
      %p52 = scmp.ne.s32.totalorder %s44, %s46
      %p53 = scmp.eq.s32.totalorder %s22, 3
      %p54 = por %p52, %p53
      %p55 = scmp.ne.s32.totalorder %s46, %s47
      %p56 = scmp.eq.s32.totalorder %s22, 0
      %p57 = por %p55, %p56
      %p58 = scmp.ne.s32.totalorder %s46, %s47
      %p59 = scmp.eq.s32.totalorder %s23, 3
      %p60 = por %p58, %p59
      %p62 = scmp.ne.s32.totalorder %s47, %s61
      %p63 = scmp.eq.s32.totalorder %s23, 0
      %p64 = por %p62, %p63
      %s66 = sadd.s32 %s65, 1
      %p69 = scmp.eq.s32.totalorder %s17, 3
      %p70 = scmp.ne.s32.totalorder %s65, %s67
      %p71 = scmp.eq.s32.totalorder %s17, 0
      %p72 = por %p70, %p71
      %p73 = scmp.ne.s32.totalorder %s65, %s67
      %p74 = scmp.eq.s32.totalorder %s22, 3
      %p75 = por %p73, %p74
      %p76 = scmp.ne.s32.totalorder %s67, %s68
      %p77 = scmp.eq.s32.totalorder %s22, 0
      %p78 = por %p76, %p77
      %p79 = scmp.ne.s32.totalorder %s67, %s68
      %p80 = scmp.eq.s32.totalorder %s23, 3
      %p81 = por %p79, %p80
      %p83 = scmp.ne.s32.totalorder %s68, %s82
      %p84 = scmp.eq.s32.totalorder %s23, 0
      %p85 = por %p83, %p84
      %s86 = ssub.s32 %s24, %s43
      %s87 = ssub.s32 %s26, %s35
      %s88 = sor.u32 %s86, %s87
      %p89 = scmp.eq.s32.totalorder %s88, 0
      %s91 = sadd.s32 %s90, 1
      %s92 = scalar_select %p89, %s90, %s91
      %p95 = pneg %p89
      %p96 = scmp.eq.s32.totalorder %s17, 3
      %p97 = por %p95, %p96
      %p98 = scmp.ne.s32.totalorder %s90, %s93
      %p99 = scmp.eq.s32.totalorder %s17, 0
      %p100 = por %p98, %p99
      %p101 = scmp.ne.s32.totalorder %s90, %s93
      %p102 = scmp.eq.s32.totalorder %s22, 3
      %p103 = por %p101, %p102
      %p104 = scmp.ne.s32.totalorder %s93, %s94
      %p105 = scmp.eq.s32.totalorder %s22, 0
      %p106 = por %p104, %p105
      %p107 = scmp.ne.s32.totalorder %s93, %s94
      %p108 = scmp.eq.s32.totalorder %s23, 3
      %p109 = por %p107, %p108
      %p111 = scmp.ne.s32.totalorder %s94, %s110
      %p112 = scmp.eq.s32.totalorder %s23, 0
      %p113 = por %p111, %p112
      %s114 = smul.u32 %s26, %s25
      %s115 = smul.u32 %s35, %s39
      %s116 = ssub.s32 %s24, %s43
      %s117 = ssub.s32 %s114, %s115
      %s118 = sor.u32 %s116, %s117
      %p119 = scmp.eq.s32.totalorder %s118, 0
      %s121 = sadd.s32 %s120, 1
      %s122 = scalar_select %p119, %s120, %s121
      %p125 = pneg %p119
      %p126 = scmp.eq.s32.totalorder %s17, 3
      %p127 = por %p125, %p126
      %p128 = scmp.ne.s32.totalorder %s120, %s123
      %p129 = scmp.eq.s32.totalorder %s17, 0
      %p130 = por %p128, %p129
      %p131 = scmp.ne.s32.totalorder %s120, %s123
      %p132 = scmp.eq.s32.totalorder %s22, 3
      %p133 = por %p131, %p132
      %p134 = scmp.ne.s32.totalorder %s123, %s124
      %p135 = scmp.eq.s32.totalorder %s22, 0
      %p136 = por %p134, %p135
      %p137 = scmp.ne.s32.totalorder %s123, %s124
      %p138 = scmp.eq.s32.totalorder %s23, 3
      %p139 = por %p137, %p138
      %p141 = scmp.ne.s32.totalorder %s124, %s140
      %p142 = scmp.eq.s32.totalorder %s23, 0
      %p143 = por %p141, %p142
      %p144 = scmp.le.s32.totalorder 1, %s17
      %p145 = scmp.lt.s32.totalorder %s17, 5
      %p146 = pnand %p144, %p145
      %p147 = pneg %p146
      // Predicated region
      $region9: #{tpu_custom_call.1} parent=5 // pred_check
        _
      $region10: #{tpu_custom_call.1} parent=5 // pred_check_branch
        %149 = sbr.rel (%p146) target = $region12
      $region11: #{tpu_custom_call.1} parent=5 // pred_region
        %s150 = ssub.s32 %s17, 1
        // Predicated region
        $region13: #{tpu_custom_call.1} parent=11 // pred_check
          %p151 = pneg %p57
        $region14: #{tpu_custom_call.1} parent=11 // pred_check_branch
          %153 = sbr.rel (%p151) target = $region16
        $region15: #{tpu_custom_call.1} parent=11 // pred_region
          _
        $region16: #{tpu_custom_call.1} parent=11 // pred_fallthru
          _
        // Predicated region
        $region17: #{tpu_custom_call.1} parent=11 // pred_check
          %p154 = pneg %p78
        $region18: #{tpu_custom_call.1} parent=11 // pred_check_branch
          %156 = sbr.rel (%p154) target = $region20
        $region19: #{tpu_custom_call.1} parent=11 // pred_region
          %s158 = ssub.s32 64, 64
          %159 = vsyncadd [#allocation6], %s158
          %s161 = sshll.u32 [#allocation5], 4
          %s162 = int_to_ptr.vmem [resolvable:$true] %s161
          %164 = dma.hbm_to_vmem [thread:$0]  %s1, 64, %s162, [#allocation6]
        $region20: #{tpu_custom_call.1} parent=11 // pred_fallthru
          _
      $region12: #{tpu_custom_call.1} parent=5 // pred_fallthru
        _
      %p165 = scmp.lt.s32.totalorder %s17, 4
      // Predicated region
      $region21: #{tpu_custom_call.1} parent=5 // pred_check
        %p166 = pneg %p165
      $region22: #{tpu_custom_call.1} parent=5 // pred_check_branch
        %168 = sbr.rel (%p166) target = $region24
      $region23: #{tpu_custom_call.1} parent=5 // pred_region
        // Predicated region
        $region25: #{tpu_custom_call.1} parent=23 // pred_check
          %p169 = pneg %p100
        $region26: #{tpu_custom_call.1} parent=23 // pred_check_branch
          %171 = sbr.rel (%p169) target = $region28
        $region27: #{tpu_custom_call.1} parent=23 // pred_region
          %s172 = sand.u32 %s90, 1
          %s173 = scalar_lea.sflag [#allocation9], %s172
          %s174 = sand.u32 %s90, 1
          %s175 = smul.addr %s174, 8
          %s176 = scalar_lea.vmem [#allocation8], %s175
          %s177 = smul.u32 2, %s26
          %s179 = ssub.s32 128, 128
          %180 = vsyncadd %s173, %s179
          %s181 = smul.addr %s24, 2
          %s182 = sadd.s32 %s177, %s181
          %s183 = smul.addr %s182, 64
          %s184 = scalar_lea.hbm %s2, %s183
          %s186 = sshll.u32 %s176, 4
          %s187 = int_to_ptr.vmem [resolvable:$true] %s186
          %189 = dma.hbm_to_vmem [thread:$0]  %s184, 128, %s187, %s173
        $region28: #{tpu_custom_call.1} parent=23 // pred_fallthru
          _
      $region24: #{tpu_custom_call.1} parent=5 // pred_fallthru
        _
      %p190 = scmp.le.s32.totalorder 1, %s17
      %p191 = scmp.lt.s32.totalorder %s17, 5
      %p192 = pnand %p190, %p191
      %p193 = pneg %p192
      // Predicated region
      $region29: #{tpu_custom_call.1} parent=5 // pred_check
        _
      $region30: #{tpu_custom_call.1} parent=5 // pred_check_branch
        %195 = sbr.rel (%p192) target = $region32
      $region31: #{tpu_custom_call.1} parent=5 // pred_region
        %s196 = ssub.s32 %s17, 1
        // Predicated region
        $region33: #{tpu_custom_call.1} parent=31 // pred_check
          %p197 = pneg %p78
        $region34: #{tpu_custom_call.1} parent=31 // pred_check_branch
          %199 = sbr.rel (%p197) target = $region36
        $region35: #{tpu_custom_call.1} parent=31 // pred_region
          %200 = dma.done [#allocation6], 64
        $region36: #{tpu_custom_call.1} parent=31 // pred_fallthru
          _
        %s201 = sand.u32 %s93, 1
        %s202 = scalar_lea.sflag [#allocation9], %s201
        %s203 = sand.u32 %s93, 1
        %s204 = smul.addr %s203, 8
        %s205 = scalar_lea.vmem [#allocation8], %s204
        // Predicated region
        $region37: #{tpu_custom_call.1} parent=31 // pred_check
          %p206 = pneg %p106
        $region38: #{tpu_custom_call.1} parent=31 // pred_check_branch
          %208 = sbr.rel (%p206) target = $region40
        $region39: #{tpu_custom_call.1} parent=31 // pred_region
          %209 = dma.done %s202, 128
        $region40: #{tpu_custom_call.1} parent=31 // pred_fallthru
          _
        %p210 = pneg %p57
        %p211 = pneg %p54
        %p212 = pneg %p78
        %p213 = pneg %p75
        %s214 = sand.u32 %s93, 1
        %s215 = scalar_lea.sflag [#allocation9], %s214
        %s216 = sand.u32 %s93, 1
        %s217 = smul.addr %s216, 8
        %s218 = scalar_lea.vmem [#allocation8], %s217
        %p219 = pneg %p106
        %p220 = pneg %p103
        %p221 = pneg %p136
        %p222 = pneg %p133
        %s223 = sand.u32 %s123, 1
        %s224 = scalar_lea.sflag [#allocation7], %s223
        %s225 = sand.u32 %s123, 1
        %s226 = smul.addr %s225, 8
        %s227 = scalar_lea.vmem [#allocation10], %s226
        %s228 = smul.u32 2, %s29
        %s229 = smul.u32 %s29, %s28
        %s230 = smul.u32 2, %s229
        %v232 = vld [vmem:[%s205] sm:$0xff]
        %v234 = vcombine.high %v232, %v232
        %v236 = vpack.c.bf16 %v232, %v232
        %v237 = vpack.c.bf16 %v234, %v234
        %p238 = scmp.eq.s32.totalorder %s28, 0
        %p239 = scmp.eq.s32.totalorder %s29, 0
        %p240 = pnand %p238, %p239
        %p241 = pneg %p240
        // Predicated region
        $region41: #{tpu_custom_call.1} parent=31 // pred_check
          _
        $region42: #{tpu_custom_call.1} parent=31 // pred_check_branch
          %243 = sbr.rel (%p240) target = $region44
        $region43: #{tpu_custom_call.1} parent=31 // pred_region
          %vm244 = vcmask 27648
          %245 = vst.msk [vmem:[#allocation2] sm:$0xf] %vm244, 0.0
        $region44: #{tpu_custom_call.1} parent=31 // pred_fallthru
          _
        // Predicated region
        $region45: #{tpu_custom_call.1} parent=31 // pred_check
          %p246 = pneg %p238
        $region46: #{tpu_custom_call.1} parent=31 // pred_check_branch
          %248 = sbr.rel (%p246) target = $region48
        $region47: #{tpu_custom_call.1} parent=31 // pred_region
          %v249 = vld [vmem:[#allocation2] sm:$0xf]
          %250 = vmatprep.subr.bf16.mxu0 0
          %251 = vmatpush1.bf16.xpose.msra.mxu0 0
          %252 = vmatprep.subr.bf16.mxu0 0
          %253 = vmatpush1.bf16.xpose.msra.mxu0 0
          %254 = vmatprep.subr.bf16.mxu0 0
          %255 = vmatpush1.bf16.xpose.msra.mxu0 0
          %256 = vmatprep.subr.bf16.mxu0 0
          %257 = vmatpush1.bf16.xpose.msra.mxu0 0
          %258 = vmatprep.subr.bf16.mxu0 0
          %259 = vmatpush1.bf16.xpose.msra.mxu0 0
          %260 = vmatprep.subr.bf16.mxu0 0
          %261 = vmatpush1.bf16.xpose.msra.mxu0 0
          %262 = vmatprep.subr.bf16.mxu0 0
          %263 = vmatpush1.bf16.xpose.msra.mxu0 0
          %264 = vmatprep.subr.bf16.mxu0 %v237
          %265 = vmatpush1.bf16.xpose.msra.mxu0 %v236
          %266 = vmatprep.subr.bf16.mxu0 0
          %267 = vmatpush2.bf16.xpose.msra.mxu0 0
          %268 = vmatprep.subr.bf16.mxu0 0
          %269 = vmatpush2.bf16.xpose.msra.mxu0 0
          %270 = vmatprep.subr.bf16.mxu0 0
          %271 = vmatpush2.bf16.xpose.msra.mxu0 0
          %272 = vmatprep.subr.bf16.mxu0 0
          %273 = vmatpush2.bf16.xpose.msra.mxu0 0
          %274 = vmatprep.subr.bf16.mxu0 0
          %275 = vmatpush2.bf16.xpose.msra.mxu0 0
          %276 = vmatprep.subr.bf16.mxu0 0
          %277 = vmatpush2.bf16.xpose.msra.mxu0 0
          %278 = vmatprep.subr.bf16.mxu0 0
          %279 = vmatpush2.bf16.xpose.msra.mxu0 0
          %280 = vmatprep.subr.bf16.mxu0 0
          %281 = vmatpush2.bf16.xpose.msra.mxu0 0
          %282 = vmatprep.mubr.bf16.mxu0 %v237
          %283 = vmatmul.mubr.bf16.gmra.mxu0 %v236
          %v284 = vpop.f32.mrf.mxu0
          %v285 = vadd.f32 0.0, %v284
          %v286 = vpop.f32.mrf.mxu0
          %v287 = vpop.f32.mrf.mxu0
          %v288 = vpop.f32.mrf.mxu0
          %289 = vdwg.mxu0
          %v290 = vadd.f32 %v249, %v285
          %vm291 = vcmask 27648
          %292 = vst.msk [vmem:[#allocation2] sm:$0xf] %vm291, %v290
        $region48: #{tpu_custom_call.1} parent=31 // pred_fallthru
          _
        %p293 = scmp.eq.s32.totalorder %s28, 1
        %p294 = pnand %p293, %p239
        %p295 = pneg %p294
        // Predicated region
        $region49: #{tpu_custom_call.1} parent=31 // pred_check
          _
        $region50: #{tpu_custom_call.1} parent=31 // pred_check_branch
          %297 = sbr.rel (%p294) target = $region52
        $region51: #{tpu_custom_call.1} parent=31 // pred_region
          %v298 = vld [vmem:[#allocation5] sm:$0xf]
          %v299 = vpack.c.bf16 %v298, %v298
          %v300 = vld [vmem:[#allocation2] sm:$0xf]
          %v301 = vpack.c.bf16 %v300, %v300
          %vm302 = vcmask 31744
          %v304 = vsel %vm302, %v301, 0
          %vm306 = vcmask 1041408
          %v308 = vsel %vm306, %v299, 0
          %310 = vmatprep.subr.bf16.mxu0 0
          %311 = vmatpush1.bf16.msra.mxu0 0
          %312 = vmatprep.subr.bf16.mxu0 0
          %313 = vmatpush1.bf16.msra.mxu0 0
          %314 = vmatprep.subr.bf16.mxu0 0
          %315 = vmatpush1.bf16.msra.mxu0 0
          %316 = vmatprep.subr.bf16.mxu0 0
          %317 = vmatpush1.bf16.msra.mxu0 0
          %318 = vmatprep.subr.bf16.mxu0 0
          %319 = vmatpush1.bf16.msra.mxu0 0
          %320 = vmatprep.subr.bf16.mxu0 0
          %321 = vmatpush1.bf16.msra.mxu0 0
          %322 = vmatprep.subr.bf16.mxu0 0
          %323 = vmatpush1.bf16.msra.mxu0 0
          %324 = vmatprep.subr.bf16.mxu0 0
          %325 = vmatpush1.bf16.msra.mxu0 %v308
          %326 = vmatprep.subr.bf16.mxu0 0
          %327 = vmatpush2.bf16.msra.mxu0 0
          %328 = vmatprep.subr.bf16.mxu0 0
          %329 = vmatpush2.bf16.msra.mxu0 0
          %330 = vmatprep.subr.bf16.mxu0 0
          %331 = vmatpush2.bf16.msra.mxu0 0
          %332 = vmatprep.subr.bf16.mxu0 0
          %333 = vmatpush2.bf16.msra.mxu0 0
          %334 = vmatprep.subr.bf16.mxu0 0
          %335 = vmatpush2.bf16.msra.mxu0 0
          %336 = vmatprep.subr.bf16.mxu0 0
          %337 = vmatpush2.bf16.msra.mxu0 0
          %338 = vmatprep.subr.bf16.mxu0 0
          %339 = vmatpush2.bf16.msra.mxu0 0
          %340 = vmatprep.subr.bf16.mxu0 0
          %341 = vmatpush2.bf16.msra.mxu0 0
          %342 = vmatprep.mubr.bf16.mxu0 0
          %343 = vmatmul.mubr.bf16.gmra.mxu0 %v304
          %v344 = vpop.f32.mrf.mxu0
          %v345 = vadd.f32 0.0, %v344
          %v346 = vpop.f32.mrf.mxu0
          %v347 = vpop.f32.mrf.mxu0
          %v348 = vpop.f32.mrf.mxu0
          %349 = vdwg.mxu0
          %s350 = sld [smem:[#allocation4]]
          %v351 = vstv %s350
          %v352 = vmul.f32 %v351, %v345
          %vm353 = vcmask 27648
          %354 = vst.msk [vmem:[#allocation3] sm:$0xf] %vm353, %v352
        $region52: #{tpu_custom_call.1} parent=31 // pred_fallthru
          _
        // Predicated region
        $region53: #{tpu_custom_call.1} parent=31 // pred_check
          %p355 = pneg %p293
        $region54: #{tpu_custom_call.1} parent=31 // pred_check_branch
          %357 = sbr.rel (%p355) target = $region56
        $region55: #{tpu_custom_call.1} parent=31 // pred_region
          %v358 = vld [vmem:[#allocation3] sm:$0xf]
          %v359 = vpack.c.bf16 %v358, %v358
          %vm360 = vcmask 31744
          %v362 = vsel %vm360, %v359, 0
          %vm364 = vcmask 1041408
          %v366 = vsel %vm364, %v236, 0
          %v369 = vsel %vm364, %v237, 0
          %371 = vmatprep.subr.bf16.mxu0 0
          %372 = vmatpush1.bf16.msra.mxu0 0
          %373 = vmatprep.subr.bf16.mxu0 0
          %374 = vmatpush1.bf16.msra.mxu0 0
          %375 = vmatprep.subr.bf16.mxu0 0
          %376 = vmatpush1.bf16.msra.mxu0 0
          %377 = vmatprep.subr.bf16.mxu0 0
          %378 = vmatpush1.bf16.msra.mxu0 0
          %379 = vmatprep.subr.bf16.mxu0 0
          %380 = vmatpush1.bf16.msra.mxu0 0
          %381 = vmatprep.subr.bf16.mxu0 0
          %382 = vmatpush1.bf16.msra.mxu0 0
          %383 = vmatprep.subr.bf16.mxu0 0
          %384 = vmatpush1.bf16.msra.mxu0 0
          %385 = vmatprep.subr.bf16.mxu0 %v369
          %386 = vmatpush1.bf16.msra.mxu0 %v366
          %387 = vmatprep.subr.bf16.mxu0 0
          %388 = vmatpush2.bf16.msra.mxu0 0
          %389 = vmatprep.subr.bf16.mxu0 0
          %390 = vmatpush2.bf16.msra.mxu0 0
          %391 = vmatprep.subr.bf16.mxu0 0
          %392 = vmatpush2.bf16.msra.mxu0 0
          %393 = vmatprep.subr.bf16.mxu0 0
          %394 = vmatpush2.bf16.msra.mxu0 0
          %395 = vmatprep.subr.bf16.mxu0 0
          %396 = vmatpush2.bf16.msra.mxu0 0
          %397 = vmatprep.subr.bf16.mxu0 0
          %398 = vmatpush2.bf16.msra.mxu0 0
          %399 = vmatprep.subr.bf16.mxu0 0
          %400 = vmatpush2.bf16.msra.mxu0 0
          %401 = vmatprep.subr.bf16.mxu0 0
          %402 = vmatpush2.bf16.msra.mxu0 0
          %403 = vmatprep.mubr.bf16.mxu0 0
          %404 = vmatmul.mubr.bf16.gmra.mxu0 %v362
          %v405 = vpop.f32.mrf.mxu0
          %v406 = vadd.f32 %v232, %v405
          %v407 = vpop.f32.mrf.mxu0
          %v408 = vadd.f32 %v234, %v407
          %v409 = vpop.f32.mrf.mxu0
          %v410 = vpop.f32.mrf.mxu0
          %411 = vdwg.mxu0
          %v414 = vcombine.low %v406, %v408
          %416 = vst [vmem:[%s227] sm:$0xff] %v414
        $region56: #{tpu_custom_call.1} parent=31 // pred_fallthru
          _
        %s417 = sand.u32 %s123, 1
        %s418 = scalar_lea.sflag [#allocation7], %s417
        %s419 = sand.u32 %s123, 1
        %s420 = smul.addr %s419, 8
        %s421 = scalar_lea.vmem [#allocation10], %s420
        // Predicated region
        $region57: #{tpu_custom_call.1} parent=31 // pred_check
          %p422 = pneg %p133
        $region58: #{tpu_custom_call.1} parent=31 // pred_check_branch
          %424 = sbr.rel (%p422) target = $region60
        $region59: #{tpu_custom_call.1} parent=31 // pred_region
          %s425 = smul.u32 %s29, %s28
          %s426 = smul.u32 2, %s425
          %s428 = ssub.s32 128, 128
          %429 = vsyncadd %s418, %s428
          %s430 = smul.addr %s27, 2
          %s431 = sadd.s32 %s426, %s430
          %s432 = smul.addr %s431, 64
          %s433 = scalar_lea.hbm %s3, %s432
          %s435 = sshll.u32 %s421, 4
          %s436 = int_to_ptr.vmem [resolvable:$true] %s435
          %438 = dma.vmem_to_hbm [thread:$0]  %s436, 128, %s433, %s418
        $region60: #{tpu_custom_call.1} parent=31 // pred_fallthru
          _
      $region32: #{tpu_custom_call.1} parent=5 // pred_fallthru
        _
      %p439 = scmp.le.s32.totalorder 2, %s17
      // Predicated region
      $region61: #{tpu_custom_call.1} parent=5 // pred_check
        %p440 = pneg %p439
      $region62: #{tpu_custom_call.1} parent=5 // pred_check_branch
        %442 = sbr.rel (%p440) target = $region64
      $region63: #{tpu_custom_call.1} parent=5 // pred_region
        %s443 = ssub.s32 %s17, 2
        // Predicated region
        $region65: #{tpu_custom_call.1} parent=63 // pred_check
          %p444 = pneg %p139
        $region66: #{tpu_custom_call.1} parent=63 // pred_check_branch
          %446 = sbr.rel (%p444) target = $region68
        $region67: #{tpu_custom_call.1} parent=63 // pred_region
          %s447 = sand.u32 %s124, 1
          %s448 = scalar_lea.sflag [#allocation7], %s447
          %s449 = sand.u32 %s124, 1
          %s450 = smul.addr %s449, 8
          %s451 = scalar_lea.vmem [#allocation10], %s450
          %452 = dma.done %s448, 128
        $region68: #{tpu_custom_call.1} parent=63 // pred_fallthru
          _
      $region64: #{tpu_custom_call.1} parent=5 // pred_fallthru
        _
    $region6: #{tpu_custom_call.1} parent=1 // loop_footer
      %s21 = sadd.s32 1, %s17
    $region7: #{tpu_custom_call.1} parent=1 // loop_footer_branch
      %16 = sbr.rel target = $region3
    $region8: #{tpu_custom_call.1} parent=1 // loop_exit
      _
    %453 = vsyncpa [#allocation6], 1
    %s454 = scalar_lea.sflag [#allocation6], 1
    %455 = vsyncpa %s454, 1
    %456 = vsyncpa [#allocation9], 1
    %s457 = scalar_lea.sflag [#allocation9], 1
    %458 = vsyncpa %s457, 1
    %459 = vsyncpa [#allocation7], 1
    %s460 = scalar_lea.sflag [#allocation7], 1
    %461 = vsyncpa %s460, 1

</llo_original>
